<compile_context>
chip_gen: v5e
topology: v5e:2x2
jax: 0.10.0
libtpu: 0.0.40
codegen_flags: <defaults>
</compile_context>

<pallas_src>
import jax
import jax.numpy as jnp
import numpy as np
from jax.experimental import pallas as pl
from jax.experimental.pallas import tpu as pltpu


_TIME_CHUNK = 8        # LSTM steps unrolled per sequential grid iteration
_LANE = 128            # lane width
_SUBLANE = 8           # sublane count


def _round_up(x, m):
    return ((x + m - 1) // m) * m


# ----------------------------------------------------------------------------
# Kernel 1: large GEMM + bias  (input-to-hidden precompute and the Linear head)
# ----------------------------------------------------------------------------
def _gemm_bias_kernel(x_ref, w_ref, b_ref, o_ref):
    o_ref[...] = (jnp.dot(x_ref[...], w_ref[...],
                          preferred_element_type=jnp.float32)
                  + b_ref[...])


def _gemm_bias(x, w, b):
    """x: (M, K), w: (K, N), b: (1, N) -> (M, N).  M % 8 == 0, K/N % 128 == 0."""
    M, K = x.shape
    N = w.shape[1]
    bm = M
    for cand in (512, 256, 128, 64, 32, 16, 8):
        if M % cand == 0:
            bm = min(cand, M)
            break
    # TODO(synk): for very large H on v7x (64 MiB VMEM), stream the N (=4H)
    # axis in chunks and single-buffer the weight block (pl.Buffered(1)).
    return pl.pallas_call(
        _gemm_bias_kernel,
        out_shape=jax.ShapeDtypeStruct((M, N), jnp.float32),
        grid_spec=pltpu.PrefetchScalarGridSpec(
            num_scalar_prefetch=0,
            grid=(M // bm,),
            in_specs=[pl.BlockSpec((bm, K), lambda i: (i, 0)),
                      pl.BlockSpec((K, N), lambda i: (0, 0)),
                      pl.BlockSpec((1, N), lambda i: (0, 0))],
            out_specs=pl.BlockSpec((bm, N), lambda i: (i, 0)),
        ),
        compiler_params=pltpu.CompilerParams(
            dimension_semantics=("parallel",)),
    )(x, w, b)


# ----------------------------------------------------------------------------
# Kernel 2: sequential LSTM recurrence (only h @ W_hh + elementwise remain)
# ----------------------------------------------------------------------------
def _make_recurrence_kernel(time_chunk: int, Hp: int):
    TC, H = time_chunk, Hp

    def kernel(xg_ref, whh_ref, h_out_ref, h_scr, c_scr):
        # xg_ref : (TC, Bp, 4*Hp)  precomputed x @ W_ih^T + (b_ih + b_hh)
        # whh_ref: (Hp, 4*Hp)
        # h_out  : (TC, Bp, Hp)
        @pl.when(pl.program_id(0) == 0)
        def _():
            h_scr[...] = jnp.zeros_like(h_scr)
            c_scr[...] = jnp.zeros_like(c_scr)

        h = h_scr[...]
        c = c_scr[...]
        for tl in range(TC):  # static unroll over the time chunk
            gates = xg_ref[tl] + jnp.dot(h, whh_ref[...],
                                         preferred_element_type=jnp.float32)
            # PyTorch gate order i, f, g, o; Hp is a multiple of 128 so every
            # slice below is lane-aligned (full vregs, no masked selects).
            i_g = jax.nn.sigmoid(gates[:, 0 * H:1 * H])
            f_g = jax.nn.sigmoid(gates[:, 1 * H:2 * H])
            g_g = jnp.tanh(gates[:, 2 * H:3 * H])
            o_g = jax.nn.sigmoid(gates[:, 3 * H:4 * H])
            c = f_g * c + i_g * g_g
            h = o_g * jnp.tanh(c)
            h_out_ref[tl] = h
        h_scr[...] = h
        c_scr[...] = c

    return kernel


def _lstm_recurrence(xg, w_hh_T, time_chunk: int, Hp: int):
    """xg: (Tp, Bp, 4Hp), w_hh_T: (Hp, 4Hp) -> h_all: (Tp, Bp, Hp)."""
    Tp, Bp, _ = xg.shape
    return pl.pallas_call(
        _make_recurrence_kernel(time_chunk, Hp),
        out_shape=jax.ShapeDtypeStruct((Tp, Bp, Hp), jnp.float32),
        grid_spec=pltpu.PrefetchScalarGridSpec(
            num_scalar_prefetch=0,
            grid=(Tp // time_chunk,),
            in_specs=[pl.BlockSpec((time_chunk, Bp, 4 * Hp),
                                   lambda t: (t, 0, 0)),
                      pl.BlockSpec((Hp, 4 * Hp), lambda t: (0, 0))],
            out_specs=pl.BlockSpec((time_chunk, Bp, Hp),
                                   lambda t: (t, 0, 0)),
            scratch_shapes=[pltpu.VMEM((Bp, Hp), jnp.float32),   # h state
                            pltpu.VMEM((Bp, Hp), jnp.float32)],  # c state
        ),
        compiler_params=pltpu.CompilerParams(
            dimension_semantics=("arbitrary",)),  # sequential over time
    )(xg, w_hh_T)


# ----------------------------------------------------------------------------
# Orchestration: layer-major sweep, padded lane-aligned layouts
# ----------------------------------------------------------------------------
def _lstm_generator_pallas(z_tm, padded, batch_size, n_lags, output_dim):
    """z_tm: (T, B, input_dim) time-major -> (B, T, output_dim) batch-first."""
    T, B, D_in = z_tm.shape
    L = padded["n_layers"]
    Hp, Dp, Op = padded["Hp"], padded["Dp"], padded["Op"]

    Bp = _round_up(B, _SUBLANE)
    Tp = _round_up(T, _TIME_CHUNK)

    # Zero-pad input (time, batch, feature).  Padded lanes/rows/steps are
    # inert: padded weight columns/rows are zero, so padded h/c lanes stay 0.
    z_pad = jnp.zeros((Tp, Bp, Dp), jnp.float32)
    z_pad = z_pad.at[:T, :B, :D_in].set(z_tm)

    M = Tp * Bp
    x = z_pad
    for l in range(L):
        # (1) big parallel GEMM: all time steps at once, bias folded in.
        xg = _gemm_bias(x.reshape(M, x.shape[-1]),
                        padded["w_ih_T"][l], padded["bias"][l])
        xg = xg.reshape(Tp, Bp, 4 * Hp)
        # (2) sequential recurrence: only h @ W_hh + gates.
        x = _lstm_recurrence(xg, padded["w_hh_T"][l], _TIME_CHUNK, Hp)

    # (3) Linear head as one big GEMM; lane-dense (Op = multiple of 128) store.
    out = _gemm_bias(x.reshape(M, Hp), padded["w_out_T"], padded["b_out"])
    out = out.reshape(Tp, Bp, Op)[:T, :B, :output_dim]
    return jnp.transpose(out, (1, 0, 2))  # (B, T, out_dim)


# ----------------------------------------------------------------------------
# Parameter construction (deterministic, mirrors the PyTorch module's shapes)
# ----------------------------------------------------------------------------
def init_params(key, input_dim, output_dim, hidden_dim, n_layers):
    H = hidden_dim
    ks = jax.random.split(key, 4 * n_layers + 1)
    k_lstm = 1.0 / np.sqrt(H)  # PyTorch LSTM default init U(-1/sqrt(H), 1/sqrt(H))

    w_ih_T, w_hh_T, bias = [], [], []
    for l in range(n_layers):
        d_l = input_dim if l == 0 else H
        kw0, kw1, kb0, kb1 = ks[4 * l:4 * l + 4]
        w_ih = jax.random.uniform(kw0, (4 * H, d_l), jnp.float32, -k_lstm, k_lstm)
        w_hh = jax.random.uniform(kw1, (4 * H, H), jnp.float32, -k_lstm, k_lstm)
        b_ih = jax.random.uniform(kb0, (4 * H,), jnp.float32, -k_lstm, k_lstm)
        b_hh = jax.random.uniform(kb1, (4 * H,), jnp.float32, -k_lstm, k_lstm)
        w_ih_T.append(w_ih.T)                 # (d_l, 4H)
        w_hh_T.append(w_hh.T)                 # (H, 4H)
        bias.append((b_ih + b_hh)[None, :])   # (1, 4H)

    # Linear head: xavier_uniform with relu gain, zero bias.
    gain = np.sqrt(2.0)
    limit = gain * np.sqrt(6.0 / (H + output_dim))
    w_out = jax.random.uniform(ks[-1], (output_dim, H), jnp.float32, -limit, limit)
    b_out = jnp.zeros((1, output_dim), jnp.float32)

    return {
        "input_dim": input_dim, "output_dim": output_dim,
        "hidden_dim": H, "n_layers": n_layers,
        "w_ih_T": w_ih_T, "w_hh_T": w_hh_T, "bias": bias,
        "w_out_T": w_out.T,   # (H, output_dim)
        "b_out": b_out,
    }


def _pad_gate_cols(w, H, Hp, d_pad):
    """w: (d, 4H) -> (d_pad, 4Hp); each gate block padded to Hp columns."""
    d = w.shape[0]
    out = jnp.zeros((d_pad, 4 * Hp), jnp.float32)
    for g in range(4):
        out = out.at[:d, g * Hp:g * Hp + H].set(w[:, g * H:(g + 1) * H])
    return out


def pad_params(params):
    """Build zero-padded, lane-aligned copies of the weights for the kernels."""
    H, L = params["hidden_dim"], params["n_layers"]
    D_in, out_dim = params["input_dim"], params["output_dim"]
    Hp = _round_up(H, _LANE)
    Dp = _round_up(D_in, _LANE)
    Op = _round_up(out_dim, _LANE)

    # TODO(synk): optionally cast padded weights to bf16 (f32 accumulation) on
    # v6e/v7x for MXU throughput; kept f32 here for tight verification.
    w_ih_T, w_hh_T, bias = [], [], []
    for l in range(L):
        d_pad = Dp if l == 0 else Hp
        w_ih_T.append(_pad_gate_cols(params["w_ih_T"][l], H, Hp, d_pad))
        w_hh_T.append(_pad_gate_cols(params["w_hh_T"][l], H, Hp, Hp))
        bias.append(_pad_gate_cols(params["bias"][l], H, Hp, 1))

    w_out_T = jnp.zeros((Hp, Op), jnp.float32)
    w_out_T = w_out_T.at[:H, :out_dim].set(params["w_out_T"])
    b_out = jnp.zeros((1, Op), jnp.float32)
    b_out = b_out.at[:, :out_dim].set(params["b_out"])

    return {"n_layers": L, "Hp": Hp, "Dp": Dp, "Op": Op,
            "w_ih_T": w_ih_T, "w_hh_T": w_hh_T, "bias": bias,
            "w_out_T": w_out_T, "b_out": b_out}


# ----------------------------------------------------------------------------
# Full forward (matches ConditionalLSTMGenerator.forward semantics)
# ----------------------------------------------------------------------------
def conditional_lstm_generator_forward(params, padded, batch_size, condition,
                                        n_lags, noise_key):
    input_dim = params["input_dim"]
    cond_dim = condition.shape[-1]
    noise_dim = input_dim - cond_dim

    # z = 0.1 * randn; first lag zeroed; cumulative sum over time.
    # Generated directly TIME-MAJOR so no transposes surround the kernels.
    z = 0.1 * jax.random.normal(noise_key, (n_lags, batch_size, noise_dim),
                                jnp.float32)
    z = z.at[0].set(0.0)
    z = jnp.cumsum(z, axis=0)

    cond_rep = jnp.broadcast_to(condition[None, :, :].astype(jnp.float32),
                                (n_lags, batch_size, cond_dim))
    z_full_tm = jnp.concatenate([z, cond_rep], axis=-1)  # (T, B, input_dim)

    out = _lstm_generator_pallas(z_full_tm, padded, batch_size, n_lags,
                                 params["output_dim"])
    return out, z_full_tm


# ----------------------------------------------------------------------------
# Pure-JAX reference (for verification only, unpadded weights)
# ----------------------------------------------------------------------------
def _reference_forward(params, z_full_bf):
    B, T, _ = z_full_bf.shape
    L, H = params["n_layers"], params["hidden_dim"]
    h = [jnp.zeros((B, H), jnp.float32) for _ in range(L)]
    c = [jnp.zeros((B, H), jnp.float32) for _ in range(L)]
    outs = []
    for t in range(T):
        x = z_full_bf[:, t, :]
        for l in range(L):
            gates = (x @ params["w_ih_T"][l] + h[l] @ params["w_hh_T"][l]
                     + params["bias"][l])
            i_g = jax.nn.sigmoid(gates[:, 0 * H:1 * H])
            f_g = jax.nn.sigmoid(gates[:, 1 * H:2 * H])
            g_g = jnp.tanh(gates[:, 2 * H:3 * H])
            o_g = jax.nn.sigmoid(gates[:, 3 * H:4 * H])
            c[l] = f_g * c[l] + i_g * g_g
            h[l] = o_g * jnp.tanh(c[l])
            x = h[l]
        outs.append(x @ params["w_out_T"] + params["b_out"])
    return jnp.stack(outs, axis=1)  # (B, T, out_dim)


# ----------------------------------------------------------------------------
if __name__ == "__main__":
    batch_size = 2
    n_lags = 8
    input_dim = 8       # LSTM input size (noise_dim + cond_dim)
    cond_dim = 4
    output_dim = 4
    hidden_dim = 32
    n_layers = 2

    root = jax.random.PRNGKey(0)
    k_params, k_cond, k_noise = jax.random.split(root, 3)

    params = init_params(k_params, input_dim, output_dim, hidden_dim, n_layers)
    padded = pad_params(params)
    condition = jax.random.normal(k_cond, (batch_size, cond_dim), jnp.float32)

    out, z_full_tm = conditional_lstm_generator_forward(
        params, padded, batch_size, condition, n_lags, k_noise)
    out = jax.block_until_ready(out)

    assert out.shape == (batch_size, n_lags, output_dim), out.shape

    z_full_bf = jnp.transpose(z_full_tm, (1, 0, 2))  # batch-first for reference
    ref = jax.block_until_ready(_reference_forward(params, z_full_bf))
    np.testing.assert_allclose(np.asarray(out), np.asarray(ref),
                               rtol=1e-4, atol=1e-5)

    print("KERNEL_OK")
</pallas_src>

<mosaic_0001>
module attributes {stable_mosaic.version = 11 : i64} {
  func.func @_gemm_bias_kernel(%arg0: i32, %arg1: memref<64x128xf32, #tpu.memory_space<vmem>>, %arg2: memref<128x512xf32, #tpu.memory_space<vmem>>, %arg3: memref<1x512xf32, #tpu.memory_space<vmem>>, %arg4: memref<64x512xf32, #tpu.memory_space<vmem>>) attributes {dimension_semantics = [#tpu.dimension_semantics<parallel>], iteration_bounds = array<i64: 1>, scalar_prefetch = 0 : i64, scratch_operands = 0 : i64, tpu.core_type = #tpu.core_type<tc>, window_params = [{transform_indices = @transform_0, window_bounds = array<i64: 64, 128>}, {pipeline_mode = #tpu.pipeline_mode<synchronous>, transform_indices = @transform_1, window_bounds = array<i64: 128, 512>}, {pipeline_mode = #tpu.pipeline_mode<synchronous>, transform_indices = @transform_2, window_bounds = array<i64: 1, 512>}, {transform_indices = @transform_3, window_bounds = array<i64: 64, 512>}]} {
    %c0 = arith.constant 0 : index
    %c0_0 = arith.constant 0 : index
    %0 = vector.load %arg1[%c0, %c0_0] : memref<64x128xf32, #tpu.memory_space<vmem>>, vector<64x128xf32>
    %c0_1 = arith.constant 0 : index
    %c0_2 = arith.constant 0 : index
    %1 = vector.load %arg2[%c0_1, %c0_2] : memref<128x512xf32, #tpu.memory_space<vmem>>, vector<128x512xf32>
    %cst = arith.constant dense<0.000000e+00> : vector<64x512xf32>
    %2 = tpu.matmul %0, %1, %cst {dimension_numbers = #tpu.dot_dimension_numbers<[1], [0], [0], [1], [0, 0, 1, 1], [], []>} : vector<64x128xf32>, vector<128x512xf32>, vector<64x512xf32> -> vector<64x512xf32>
    %c0_3 = arith.constant 0 : index
    %c0_4 = arith.constant 0 : index
    %3 = vector.load %arg3[%c0_3, %c0_4] : memref<1x512xf32, #tpu.memory_space<vmem>>, vector<1x512xf32>
    %4 = vector.broadcast %3 : vector<1x512xf32> to vector<64x512xf32>
    %5 = arith.addf %2, %4 : vector<64x512xf32>
    %c0_5 = arith.constant 0 : index
    %c0_6 = arith.constant 0 : index
    %6 = vector.load %arg4[%c0_5, %c0_6] : memref<64x512xf32, #tpu.memory_space<vmem>>, vector<64x512xf32>
    tpu.vector_store %arg4[%c0_5, %c0_6], %5 {strides = array<i32>} : memref<64x512xf32, #tpu.memory_space<vmem>>, vector<64x512xf32>,
    return
  }
  func.func @transform_0(%arg0: i32) -> (i32, i32) {
    %c0_i32 = arith.constant 0 : i32
    %c0_i32_0 = arith.constant 0 : i32
    return %arg0, %c0_i32 : i32, i32
  }
  func.func @transform_1(%arg0: i32) -> (i32, i32) {
    %c0_i32 = arith.constant 0 : i32
    %c0_i32_0 = arith.constant 0 : i32
    %c0_i32_1 = arith.constant 0 : i32
    return %c0_i32, %c0_i32_0 : i32, i32
  }
  func.func @transform_2(%arg0: i32) -> (i32, i32) {
    %c0_i32 = arith.constant 0 : i32
    %c0_i32_0 = arith.constant 0 : i32
    %c0_i32_1 = arith.constant 0 : i32
    return %c0_i32, %c0_i32_0 : i32, i32
  }
  func.func @transform_3(%arg0: i32) -> (i32, i32) {
    %c0_i32 = arith.constant 0 : i32
    %c0_i32_0 = arith.constant 0 : i32
    return %arg0, %c0_i32 : i32, i32
  }
}

</mosaic_0001>

<llo_original>
// kernel: tpu_custom_call.1
$region0: #{tpu_custom_call.1}
  #allocation0 [shape = 'u32[]', space=smem, size = 0x4, offset = 0x4, fixed_abs, tag = 'smem constant byte address 0x4 - core index']
  #allocation1 [shape = 'u32[72,128]{1,0:T(1,128)}', space=vmem, size = 0x9000, scoped, tag = 'internal scratch']
  %s0 = inlined_call_operand.hbm [shape: f32[64,128], index: 0, kind: input, shape index: {}]
  %s1 = inlined_call_operand.hbm [shape: f32[128,512], index: 1, kind: input, shape index: {}]
  %s2 = inlined_call_operand.hbm [shape: f32[1,512], index: 2, kind: input, shape index: {}]
  %s3 = inlined_call_operand.hbm [shape: f32[64,512], index: 3, kind: output, shape index: {}]
  %s4 = sld [smem:[#allocation0]]
  $region34: #{tpu_custom_call.1} parent=0
    _
  %s6 = ssub.s32 1, %s4
  %s7 = scalar_select 0, %s6, %s4
  $region1: #{tpu_custom_call.1} parent=0
    #allocation2 [shape = 'u8[32768]{0}', space=vmem, size = 0x8000, scoped, tag = 'input window, operand 0, single buffered']
    #allocation3 [shape = 's32[1]{0}', space=sflag, size = 0x4, scoped, tag = 'scoped memory for tpu_custom_call.1']
    #allocation4 [shape = 's32[1]{0}', space=sflag, size = 0x4, scoped, tag = 'scoped memory for tpu_custom_call.1']
    #allocation5 [shape = 'u8[262144]{0}', space=vmem, size = 0x40000, scoped, tag = 'input window, operand 1, single buffered']
    #allocation6 [shape = 's32[1]{0}', space=sflag, size = 0x4, scoped, tag = 'scoped memory for tpu_custom_call.1']
    #allocation7 [shape = 'u8[2048]{0}', space=vmem, size = 0x800, scoped, tag = 'input window, operand 2, single buffered']
    #allocation8 [shape = 'u8[131072]{0}', space=vmem, size = 0x20000, scoped, tag = 'output window, operand 0, single buffered']
    %8 = vsyncpa [#allocation3], 0
    %9 = vsyncpa [#allocation6], 0
    %10 = vsyncpa [#allocation4], 0
    // Predicated region
    $region2: #{tpu_custom_call.1} parent=1 // pred_check
      _
    $region3: #{tpu_custom_call.1} parent=1 // pred_check_branch
      %12 = sbr.rel (0) target = $region5
    $region4: #{tpu_custom_call.1} parent=1 // pred_region
      %14 = vsyncadd [#allocation3], 0
      %s15 = sshll.u32 %s0, 4
      %s16 = int_to_ptr.hbm [resolvable:$true] %s15
      %s17 = sshll.u32 [#allocation2], 4
      %s18 = int_to_ptr.vmem [resolvable:$true] %s17
      %23 = dma.hbm_to_vmem [thread:$0]  %s16, 1024, %s18, [#allocation3], 128, 128, 8
    $region5: #{tpu_custom_call.1} parent=1 // pred_fallthru
      _
    // Predicated region
    $region6: #{tpu_custom_call.1} parent=1 // pred_check
      _
    $region7: #{tpu_custom_call.1} parent=1 // pred_check_branch
      %25 = sbr.rel (0) target = $region9
    $region8: #{tpu_custom_call.1} parent=1 // pred_region
      %27 = vsyncadd [#allocation6], 0
      %s28 = sshll.u32 %s1, 4
      %s29 = int_to_ptr.hbm [resolvable:$true] %s28
      %s30 = sshll.u32 [#allocation5], 4
      %s31 = int_to_ptr.vmem [resolvable:$true] %s30
      %36 = dma.hbm_to_vmem [thread:$0]  %s29, 8192, %s31, [#allocation6], 512, 512, 32
    $region9: #{tpu_custom_call.1} parent=1 // pred_fallthru
      _
    // Predicated region
    $region10: #{tpu_custom_call.1} parent=1 // pred_check
      _
    $region11: #{tpu_custom_call.1} parent=1 // pred_check_branch
      %38 = sbr.rel (0) target = $region13
    $region12: #{tpu_custom_call.1} parent=1 // pred_region
      %40 = vsyncadd [#allocation6], 0
      %s42 = sshll.u32 %s2, 4
      %s43 = int_to_ptr.hbm [resolvable:$true] %s42
      %s44 = sshll.u32 [#allocation7], 4
      %s45 = int_to_ptr.vmem [resolvable:$true] %s44
      %47 = dma.hbm_to_vmem [thread:$0]  %s43, 64, %s45, [#allocation6]
    $region13: #{tpu_custom_call.1} parent=1 // pred_fallthru
      _
    // Predicated region
    $region14: #{tpu_custom_call.1} parent=1 // pred_check
      _
    $region15: #{tpu_custom_call.1} parent=1 // pred_check_branch
      %49 = sbr.rel (0) target = $region17
    $region16: #{tpu_custom_call.1} parent=1 // pred_region
      %51 = dma.done [#allocation3], 1024
    $region17: #{tpu_custom_call.1} parent=1 // pred_fallthru
      _
    // Predicated region
    $region18: #{tpu_custom_call.1} parent=1 // pred_check
      _
    $region19: #{tpu_custom_call.1} parent=1 // pred_check_branch
      %53 = sbr.rel (0) target = $region21
    $region20: #{tpu_custom_call.1} parent=1 // pred_region
      %55 = dma.done [#allocation6], 8192
    $region21: #{tpu_custom_call.1} parent=1 // pred_fallthru
      _
    // Predicated region
    $region22: #{tpu_custom_call.1} parent=1 // pred_check
      _
    $region23: #{tpu_custom_call.1} parent=1 // pred_check_branch
      %57 = sbr.rel (0) target = $region25
    $region24: #{tpu_custom_call.1} parent=1 // pred_region
      %59 = dma.done [#allocation6], 64
    $region25: #{tpu_custom_call.1} parent=1 // pred_fallthru
      _
    %v60 = vld [vmem:[#allocation2] sm:$0xff]
    %v61 = vld [vmem:[#allocation2 + $0x8] sm:$0xff]
    %v62 = vld [vmem:[#allocation2 + $0x10] sm:$0xff]
    %v63 = vld [vmem:[#allocation2 + $0x18] sm:$0xff]
    %v64 = vld [vmem:[#allocation2 + $0x20] sm:$0xff]
    %v65 = vld [vmem:[#allocation2 + $0x28] sm:$0xff]
    %v66 = vld [vmem:[#allocation2 + $0x30] sm:$0xff]
    %v67 = vld [vmem:[#allocation2 + $0x38] sm:$0xff]
    %v68 = vld [vmem:[#allocation5] sm:$0xff]
    %v69 = vld [vmem:[#allocation5 + $0x8] sm:$0xff]
    %v70 = vld [vmem:[#allocation5 + $0x10] sm:$0xff]
    %v71 = vld [vmem:[#allocation5 + $0x18] sm:$0xff]
    %v72 = vld [vmem:[#allocation5 + $0x20] sm:$0xff]
    %v73 = vld [vmem:[#allocation5 + $0x28] sm:$0xff]
    %v74 = vld [vmem:[#allocation5 + $0x30] sm:$0xff]
    %v75 = vld [vmem:[#allocation5 + $0x38] sm:$0xff]
    %v76 = vld [vmem:[#allocation5 + $0x40] sm:$0xff]
    %v77 = vld [vmem:[#allocation5 + $0x48] sm:$0xff]
    %v78 = vld [vmem:[#allocation5 + $0x50] sm:$0xff]
    %v79 = vld [vmem:[#allocation5 + $0x58] sm:$0xff]
    %v80 = vld [vmem:[#allocation5 + $0x60] sm:$0xff]
    %v81 = vld [vmem:[#allocation5 + $0x68] sm:$0xff]
    %v82 = vld [vmem:[#allocation5 + $0x70] sm:$0xff]
    %v83 = vld [vmem:[#allocation5 + $0x78] sm:$0xff]
    %v84 = vld [vmem:[#allocation5 + $0x80] sm:$0xff]
    %v85 = vld [vmem:[#allocation5 + $0x88] sm:$0xff]
    %v86 = vld [vmem:[#allocation5 + $0x90] sm:$0xff]
    %v87 = vld [vmem:[#allocation5 + $0x98] sm:$0xff]
    %v88 = vld [vmem:[#allocation5 + $0xa0] sm:$0xff]
    %v89 = vld [vmem:[#allocation5 + $0xa8] sm:$0xff]
    %v90 = vld [vmem:[#allocation5 + $0xb0] sm:$0xff]
    %v91 = vld [vmem:[#allocation5 + $0xb8] sm:$0xff]
    %v92 = vld [vmem:[#allocation5 + $0xc0] sm:$0xff]
    %v93 = vld [vmem:[#allocation5 + $0xc8] sm:$0xff]
    %v94 = vld [vmem:[#allocation5 + $0xd0] sm:$0xff]
    %v95 = vld [vmem:[#allocation5 + $0xd8] sm:$0xff]
    %v96 = vld [vmem:[#allocation5 + $0xe0] sm:$0xff]
    %v97 = vld [vmem:[#allocation5 + $0xe8] sm:$0xff]
    %v98 = vld [vmem:[#allocation5 + $0xf0] sm:$0xff]
    %v99 = vld [vmem:[#allocation5 + $0xf8] sm:$0xff]
    %v100 = vld [vmem:[#allocation5 + $0x100] sm:$0xff]
    %v101 = vld [vmem:[#allocation5 + $0x108] sm:$0xff]
    %v102 = vld [vmem:[#allocation5 + $0x110] sm:$0xff]
    %v103 = vld [vmem:[#allocation5 + $0x118] sm:$0xff]
    %v104 = vld [vmem:[#allocation5 + $0x120] sm:$0xff]
    %v105 = vld [vmem:[#allocation5 + $0x128] sm:$0xff]
    %v106 = vld [vmem:[#allocation5 + $0x130] sm:$0xff]
    %v107 = vld [vmem:[#allocation5 + $0x138] sm:$0xff]
    %v108 = vld [vmem:[#allocation5 + $0x140] sm:$0xff]
    %v109 = vld [vmem:[#allocation5 + $0x148] sm:$0xff]
    %v110 = vld [vmem:[#allocation5 + $0x150] sm:$0xff]
    %v111 = vld [vmem:[#allocation5 + $0x158] sm:$0xff]
    %v112 = vld [vmem:[#allocation5 + $0x160] sm:$0xff]
    %v113 = vld [vmem:[#allocation5 + $0x168] sm:$0xff]
    %v114 = vld [vmem:[#allocation5 + $0x170] sm:$0xff]
    %v115 = vld [vmem:[#allocation5 + $0x178] sm:$0xff]
    %v116 = vld [vmem:[#allocation5 + $0x180] sm:$0xff]
    %v117 = vld [vmem:[#allocation5 + $0x188] sm:$0xff]
    %v118 = vld [vmem:[#allocation5 + $0x190] sm:$0xff]
    %v119 = vld [vmem:[#allocation5 + $0x198] sm:$0xff]
    %v120 = vld [vmem:[#allocation5 + $0x1a0] sm:$0xff]
    %v121 = vld [vmem:[#allocation5 + $0x1a8] sm:$0xff]
    %v122 = vld [vmem:[#allocation5 + $0x1b0] sm:$0xff]
    %v123 = vld [vmem:[#allocation5 + $0x1b8] sm:$0xff]
    %v124 = vld [vmem:[#allocation5 + $0x1c0] sm:$0xff]
    %v125 = vld [vmem:[#allocation5 + $0x1c8] sm:$0xff]
    %v126 = vld [vmem:[#allocation5 + $0x1d0] sm:$0xff]
    %v127 = vld [vmem:[#allocation5 + $0x1d8] sm:$0xff]
    %v128 = vld [vmem:[#allocation5 + $0x1e0] sm:$0xff]
    %v129 = vld [vmem:[#allocation5 + $0x1e8] sm:$0xff]
    %v130 = vld [vmem:[#allocation5 + $0x1f0] sm:$0xff]
    %v131 = vld [vmem:[#allocation5 + $0x1f8] sm:$0xff]
    %v132 = vld [vmem:[#allocation7] sm:$0xf]
    %v134 = vperm.slane %v132, 0
    %v135 = vperm.slane %v132, 1
    %v136 = vperm.slane %v132, 2
    %v137 = vperm.slane %v132, 3
    %142 = vmatpush.msra.mxu0 %v128
    %143 = vmatpush.msra.mxu0 %v124
    %144 = vmatpush.msra.mxu0 %v120
    %145 = vmatpush.msra.mxu0 %v116
    %146 = vmatpush.msra.mxu0 %v112
    %147 = vmatpush.msra.mxu0 %v108
    %148 = vmatpush.msra.mxu0 %v104
    %149 = vmatpush.msra.mxu0 %v100
    %150 = vmatpush.msra.mxu0 %v96
    %151 = vmatpush.msra.mxu0 %v92
    %152 = vmatpush.msra.mxu0 %v88
    %153 = vmatpush.msra.mxu0 %v84
    %154 = vmatpush.msra.mxu0 %v80
    %155 = vmatpush.msra.mxu0 %v76
    %156 = vmatpush.msra.mxu0 %v72
    %157 = vmatpush.msra.mxu0 %v68
    %158 = vmatmul.f32.gmra.mxu0 %v60
    %v159 = vpop.f32.mrf.mxu0
    %v160 = vadd.f32 %v134, %v159
    %161 = vmatmul.f32.gmra.mxu0 %v61
    %v162 = vpop.f32.mrf.mxu0
    %v163 = vadd.f32 %v134, %v162
    %164 = vmatmul.f32.gmra.mxu0 %v62
    %v165 = vpop.f32.mrf.mxu0
    %v166 = vadd.f32 %v134, %v165
    %167 = vmatmul.f32.gmra.mxu0 %v63
    %v168 = vpop.f32.mrf.mxu0
    %v169 = vadd.f32 %v134, %v168
    %170 = vmatmul.f32.gmra.mxu0 %v64
    %v171 = vpop.f32.mrf.mxu0
    %v172 = vadd.f32 %v134, %v171
    %173 = vmatmul.f32.gmra.mxu0 %v65
    %v174 = vpop.f32.mrf.mxu0
    %v175 = vadd.f32 %v134, %v174
    %176 = vmatmul.f32.gmra.mxu0 %v66
    %v177 = vpop.f32.mrf.mxu0
    %v178 = vadd.f32 %v134, %v177
    %179 = vmatmul.f32.gmra.mxu0 %v67
    %v180 = vpop.f32.mrf.mxu0
    %v181 = vadd.f32 %v134, %v180
    %182 = vdwg.mxu0
    %183 = vmatpush.msra.mxu0 %v129
    %184 = vmatpush.msra.mxu0 %v125
    %185 = vmatpush.msra.mxu0 %v121
    %186 = vmatpush.msra.mxu0 %v117
    %187 = vmatpush.msra.mxu0 %v113
    %188 = vmatpush.msra.mxu0 %v109
    %189 = vmatpush.msra.mxu0 %v105
    %190 = vmatpush.msra.mxu0 %v101
    %191 = vmatpush.msra.mxu0 %v97
    %192 = vmatpush.msra.mxu0 %v93
    %193 = vmatpush.msra.mxu0 %v89
    %194 = vmatpush.msra.mxu0 %v85
    %195 = vmatpush.msra.mxu0 %v81
    %196 = vmatpush.msra.mxu0 %v77
    %197 = vmatpush.msra.mxu0 %v73
    %198 = vmatpush.msra.mxu0 %v69
    %199 = vmatmul.f32.gmra.mxu0 %v60
    %v200 = vpop.f32.mrf.mxu0
    %v201 = vadd.f32 %v135, %v200
    %202 = vmatmul.f32.gmra.mxu0 %v61
    %v203 = vpop.f32.mrf.mxu0
    %v204 = vadd.f32 %v135, %v203
    %205 = vmatmul.f32.gmra.mxu0 %v62
    %v206 = vpop.f32.mrf.mxu0
    %v207 = vadd.f32 %v135, %v206
    %208 = vmatmul.f32.gmra.mxu0 %v63
    %v209 = vpop.f32.mrf.mxu0
    %v210 = vadd.f32 %v135, %v209
    %211 = vmatmul.f32.gmra.mxu0 %v64
    %v212 = vpop.f32.mrf.mxu0
    %v213 = vadd.f32 %v135, %v212
    %214 = vmatmul.f32.gmra.mxu0 %v65
    %v215 = vpop.f32.mrf.mxu0
    %v216 = vadd.f32 %v135, %v215
    %217 = vmatmul.f32.gmra.mxu0 %v66
    %v218 = vpop.f32.mrf.mxu0
    %v219 = vadd.f32 %v135, %v218
    %220 = vmatmul.f32.gmra.mxu0 %v67
    %v221 = vpop.f32.mrf.mxu0
    %v222 = vadd.f32 %v135, %v221
    %223 = vdwg.mxu0
    %224 = vmatpush.msra.mxu0 %v130
    %225 = vmatpush.msra.mxu0 %v126
    %226 = vmatpush.msra.mxu0 %v122
    %227 = vmatpush.msra.mxu0 %v118
    %228 = vmatpush.msra.mxu0 %v114
    %229 = vmatpush.msra.mxu0 %v110
    %230 = vmatpush.msra.mxu0 %v106
    %231 = vmatpush.msra.mxu0 %v102
    %232 = vmatpush.msra.mxu0 %v98
    %233 = vmatpush.msra.mxu0 %v94
    %234 = vmatpush.msra.mxu0 %v90
    %235 = vmatpush.msra.mxu0 %v86
    %236 = vmatpush.msra.mxu0 %v82
    %237 = vmatpush.msra.mxu0 %v78
    %238 = vmatpush.msra.mxu0 %v74
    %239 = vmatpush.msra.mxu0 %v70
    %240 = vmatmul.f32.gmra.mxu0 %v60
    %v241 = vpop.f32.mrf.mxu0
    %v242 = vadd.f32 %v136, %v241
    %243 = vmatmul.f32.gmra.mxu0 %v61
    %v244 = vpop.f32.mrf.mxu0
    %v245 = vadd.f32 %v136, %v244
    %246 = vmatmul.f32.gmra.mxu0 %v62
    %v247 = vpop.f32.mrf.mxu0
    %v248 = vadd.f32 %v136, %v247
    %249 = vmatmul.f32.gmra.mxu0 %v63
    %v250 = vpop.f32.mrf.mxu0
    %v251 = vadd.f32 %v136, %v250
    %252 = vmatmul.f32.gmra.mxu0 %v64
    %v253 = vpop.f32.mrf.mxu0
    %v254 = vadd.f32 %v136, %v253
    %255 = vmatmul.f32.gmra.mxu0 %v65
    %v256 = vpop.f32.mrf.mxu0
    %v257 = vadd.f32 %v136, %v256
    %258 = vmatmul.f32.gmra.mxu0 %v66
    %v259 = vpop.f32.mrf.mxu0
    %v260 = vadd.f32 %v136, %v259
    %261 = vmatmul.f32.gmra.mxu0 %v67
    %v262 = vpop.f32.mrf.mxu0
    %v263 = vadd.f32 %v136, %v262
    %264 = vdwg.mxu0
    %265 = vmatpush.msra.mxu0 %v131
    %266 = vmatpush.msra.mxu0 %v127
    %267 = vmatpush.msra.mxu0 %v123
    %268 = vmatpush.msra.mxu0 %v119
    %269 = vmatpush.msra.mxu0 %v115
    %270 = vmatpush.msra.mxu0 %v111
    %271 = vmatpush.msra.mxu0 %v107
    %272 = vmatpush.msra.mxu0 %v103
    %273 = vmatpush.msra.mxu0 %v99
    %274 = vmatpush.msra.mxu0 %v95
    %275 = vmatpush.msra.mxu0 %v91
    %276 = vmatpush.msra.mxu0 %v87
    %277 = vmatpush.msra.mxu0 %v83
    %278 = vmatpush.msra.mxu0 %v79
    %279 = vmatpush.msra.mxu0 %v75
    %280 = vmatpush.msra.mxu0 %v71
    %281 = vmatmul.f32.gmra.mxu0 %v60
    %v282 = vpop.f32.mrf.mxu0
    %v283 = vadd.f32 %v137, %v282
    %284 = vmatmul.f32.gmra.mxu0 %v61
    %v285 = vpop.f32.mrf.mxu0
    %v286 = vadd.f32 %v137, %v285
    %287 = vmatmul.f32.gmra.mxu0 %v62
    %v288 = vpop.f32.mrf.mxu0
    %v289 = vadd.f32 %v137, %v288
    %290 = vmatmul.f32.gmra.mxu0 %v63
    %v291 = vpop.f32.mrf.mxu0
    %v292 = vadd.f32 %v137, %v291
    %293 = vmatmul.f32.gmra.mxu0 %v64
    %v294 = vpop.f32.mrf.mxu0
    %v295 = vadd.f32 %v137, %v294
    %296 = vmatmul.f32.gmra.mxu0 %v65
    %v297 = vpop.f32.mrf.mxu0
    %v298 = vadd.f32 %v137, %v297
    %299 = vmatmul.f32.gmra.mxu0 %v66
    %v300 = vpop.f32.mrf.mxu0
    %v301 = vadd.f32 %v137, %v300
    %302 = vmatmul.f32.gmra.mxu0 %v67
    %v303 = vpop.f32.mrf.mxu0
    %v304 = vadd.f32 %v137, %v303
    %305 = vdwg.mxu0
    %306 = vst [vmem:[#allocation8] sm:$0xff] %v160
    %307 = vst [vmem:[#allocation8 + $0x8] sm:$0xff] %v201
    %308 = vst [vmem:[#allocation8 + $0x10] sm:$0xff] %v242
    %309 = vst [vmem:[#allocation8 + $0x18] sm:$0xff] %v283
    %310 = vst [vmem:[#allocation8 + $0x20] sm:$0xff] %v163
    %311 = vst [vmem:[#allocation8 + $0x28] sm:$0xff] %v204
    %312 = vst [vmem:[#allocation8 + $0x30] sm:$0xff] %v245
    %313 = vst [vmem:[#allocation8 + $0x38] sm:$0xff] %v286
    %314 = vst [vmem:[#allocation8 + $0x40] sm:$0xff] %v166
    %315 = vst [vmem:[#allocation8 + $0x48] sm:$0xff] %v207
    %316 = vst [vmem:[#allocation8 + $0x50] sm:$0xff] %v248
    %317 = vst [vmem:[#allocation8 + $0x58] sm:$0xff] %v289
    %318 = vst [vmem:[#allocation8 + $0x60] sm:$0xff] %v169
    %319 = vst [vmem:[#allocation8 + $0x68] sm:$0xff] %v210
    %320 = vst [vmem:[#allocation8 + $0x70] sm:$0xff] %v251
    %321 = vst [vmem:[#allocation8 + $0x78] sm:$0xff] %v292
    %322 = vst [vmem:[#allocation8 + $0x80] sm:$0xff] %v172
    %323 = vst [vmem:[#allocation8 + $0x88] sm:$0xff] %v213
    %324 = vst [vmem:[#allocation8 + $0x90] sm:$0xff] %v254
    %325 = vst [vmem:[#allocation8 + $0x98] sm:$0xff] %v295
    %326 = vst [vmem:[#allocation8 + $0xa0] sm:$0xff] %v175
    %327 = vst [vmem:[#allocation8 + $0xa8] sm:$0xff] %v216
    %328 = vst [vmem:[#allocation8 + $0xb0] sm:$0xff] %v257
    %329 = vst [vmem:[#allocation8 + $0xb8] sm:$0xff] %v298
    %330 = vst [vmem:[#allocation8 + $0xc0] sm:$0xff] %v178
    %331 = vst [vmem:[#allocation8 + $0xc8] sm:$0xff] %v219
    %332 = vst [vmem:[#allocation8 + $0xd0] sm:$0xff] %v260
    %333 = vst [vmem:[#allocation8 + $0xd8] sm:$0xff] %v301
    %334 = vst [vmem:[#allocation8 + $0xe0] sm:$0xff] %v181
    %335 = vst [vmem:[#allocation8 + $0xe8] sm:$0xff] %v222
    %336 = vst [vmem:[#allocation8 + $0xf0] sm:$0xff] %v263
    %337 = vst [vmem:[#allocation8 + $0xf8] sm:$0xff] %v304
    // Predicated region
    $region26: #{tpu_custom_call.1} parent=1 // pred_check
      _
    $region27: #{tpu_custom_call.1} parent=1 // pred_check_branch
      %339 = sbr.rel (0) target = $region29
    $region28: #{tpu_custom_call.1} parent=1 // pred_region
      %341 = vsyncadd [#allocation4], 0
      %s342 = sshll.u32 [#allocation8], 4
      %s343 = int_to_ptr.vmem [resolvable:$true] %s342
      %s344 = sshll.u32 %s3, 4
      %s345 = int_to_ptr.hbm [resolvable:$true] %s344
      %350 = dma.vmem_to_hbm [thread:$0]  %s343, 4096, %s345, [#allocation4], 512, 512, 32
    $region29: #{tpu_custom_call.1} parent=1 // pred_fallthru
      _
    // Predicated region
    $region30: #{tpu_custom_call.1} parent=1 // pred_check
      _
    $region31: #{tpu_custom_call.1} parent=1 // pred_check_branch
      %352 = sbr.rel (0) target = $region33
    $region32: #{tpu_custom_call.1} parent=1 // pred_region
      %354 = dma.done [#allocation4], 4096
    $region33: #{tpu_custom_call.1} parent=1 // pred_fallthru
      _
    %355 = vsyncpa [#allocation3], 1
    %356 = vsyncpa [#allocation6], 1
    %357 = vsyncpa [#allocation4], 1

</llo_original>
